<compile_context>
chip_gen: v7x
topology: tpu7x:2x2x1
jax: 0.10.0
libtpu: 0.0.40
codegen_flags: <defaults>
</compile_context>

<pallas_src>
import functools

import jax
import jax.numpy as jnp
from jax.experimental import pallas as pl
from jax.experimental.pallas import tpu as pltpu

OBS_DIM = 4          # env.observation_space.shape[0] for CartPole-v1
HIDDEN = 128
N_ACTIONS = 2        # env.action_space.n for CartPole-v1
CHUNK = 128          # lane width of one in-kernel compute chunk (one lane-tile)
DEFAULT_TILE_B = 8192


def _agent_kernel(x_ref, w1b_ref, b1b_ref, wdb_ref, bdb_ref, out_ref):
    # x_ref:   (OBS_DIM, TILE_B)         observations, batch on lanes
    # w1b_ref: (OBS_DIM, HIDDEN, CHUNK)  fc1 weight columns, pre-broadcast on lanes
    # b1b_ref: (HIDDEN, CHUNK)           fc1 bias, pre-broadcast on lanes
    # wdb_ref: (HIDDEN, CHUNK)           fc3 weight diff w2[0]-w2[1], pre-broadcast
    # bdb_ref: (1, CHUNK)                fc3 bias   diff b2[0]-b2[1], pre-broadcast
    # out_ref: (N_ACTIONS, TILE_B)       action probabilities, batch on lanes
    num_chunks = out_ref.shape[1] // CHUNK  # static: TILE_B is a multiple of CHUNK

    @pl.loop(0, num_chunks)
    def _(c):
        start = pl.multiple_of(c * CHUNK, CHUNK)
        xc = x_ref[:, pl.ds(start, CHUNK)]                # (OBS_DIM, CHUNK)

        # fc1: h = tanh(W1 @ x + b1).  K = 4 -> 4 unrolled VPU broadcast
        # multiply-adds (outer products); weights arrive already lane-broadcast
        # so this is pure element-wise work.  Live value: (128, 128) = 16 vregs.
        acc = b1b_ref[...]                                # (HIDDEN, CHUNK)
        for k in range(OBS_DIM):
            acc = acc + w1b_ref[k] * xc[k:k + 1, :]
        h = jnp.tanh(acc)                                 # EUP

        # fc3 + 2-class softmax as sigmoid of the logit difference.
        # VPU multiply + sublane reduction (XLU) -- no M=1 MXU matmul, and h
        # never exists wider than one chunk.
        diff = jnp.sum(h * wdb_ref[...], axis=0, keepdims=True) + bdb_ref[...]
        p0 = 1.0 / (1.0 + jnp.exp(-diff))                 # f32-safe for any diff

        # Single (2, CHUNK) store of both probability rows.
        out_ref[:, pl.ds(start, CHUNK)] = jnp.concatenate([p0, 1.0 - p0], axis=0)


def prepare_params(w1, b1, w2, b2):
    """One-time layout prep (hoisted out of the rollout path).

    w1: (HIDDEN, OBS_DIM), b1: (HIDDEN,), w2: (N_ACTIONS, HIDDEN), b2: (N_ACTIONS,)
    All weights are pre-broadcast along the lane (batch-chunk) axis so the kernel
    does no in-kernel lane broadcasts.  Total prepared size: ~0.4 MiB.
    """
    w1 = jnp.asarray(w1, jnp.float32)
    b1 = jnp.asarray(b1, jnp.float32)
    w2 = jnp.asarray(w2, jnp.float32)
    b2 = jnp.asarray(b2, jnp.float32)

    w1_b = jnp.broadcast_to(w1.T[:, :, None], (OBS_DIM, HIDDEN, CHUNK))   # (4,128,128)
    b1_b = jnp.broadcast_to(b1[:, None], (HIDDEN, CHUNK))                 # (128,128)
    wd = w2[0] - w2[1]
    bd = b2[0] - b2[1]
    wd_b = jnp.broadcast_to(wd[:, None], (HIDDEN, CHUNK))                 # (128,128)
    bd_b = jnp.broadcast_to(bd[None, None], (1, CHUNK))                   # (1,128)
    return (w1_b, b1_b, wd_b, bd_b)


def _tiling(batch, tile_b):
    """Pick (tile, grid_n, padded_batch): big lane-dense tiles, but keep >= 2
    grid steps when possible so v7x's two TensorCores both get work."""
    units = pl.cdiv(max(batch, 1), CHUNK)          # 128-lane units after padding
    max_units = max(1, tile_b // CHUNK)
    if units >= 2:
        tile_units = max(1, min(max_units, pl.cdiv(units, 2)))
    else:
        tile_units = 1
    grid_n = pl.cdiv(units, tile_units)
    tile = tile_units * CHUNK
    return tile, grid_n, grid_n * tile


@functools.partial(jax.jit, static_argnames=("tile_b",))
def agent_forward_lane(x_t, params, *, tile_b=DEFAULT_TILE_B):
    """Lane-dense fast path.

    x_t: (OBS_DIM, B) float observations with batch on the last (lane) axis.
    Returns (N_ACTIONS, B) softmax probabilities, batch on lanes.
    """
    w1_b, b1_b, wd_b, bd_b = params
    B = x_t.shape[1]
    tile, grid_n, b_pad = _tiling(B, tile_b)

    x_t = x_t.astype(jnp.float32)
    if b_pad != B:
        x_t = jnp.pad(x_t, ((0, 0), (0, b_pad - B)))

    out_t = pl.pallas_call(
        _agent_kernel,
        out_shape=jax.ShapeDtypeStruct((N_ACTIONS, b_pad), jnp.float32),
        grid=(grid_n,),
        in_specs=[
            pl.BlockSpec((OBS_DIM, tile), lambda i: (0, i)),          # x tile
            pl.BlockSpec((OBS_DIM, HIDDEN, CHUNK), lambda i: (0, 0, 0)),  # w1 (resident)
            pl.BlockSpec((HIDDEN, CHUNK), lambda i: (0, 0)),          # b1 (resident)
            pl.BlockSpec((HIDDEN, CHUNK), lambda i: (0, 0)),          # w_delta
            pl.BlockSpec((1, CHUNK), lambda i: (0, 0)),               # b_delta
        ],
        out_specs=pl.BlockSpec((N_ACTIONS, tile), lambda i: (0, i)),
        compiler_params=pltpu.CompilerParams(
            # Batch tiles are independent -> shard across TensorCores (v7x).
            dimension_semantics=("parallel",),
        ),
    )(x_t, w1_b, b1_b, wd_b, bd_b)

    return out_t[:, :B]


@functools.partial(jax.jit, static_argnames=("tile_b",))
def agent_forward(x, params, *, tile_b=DEFAULT_TILE_B):
    """PyTorch-compatible entry: x (B, OBS_DIM) -> (B, N_ACTIONS) probabilities.

    Jitted end-to-end so the transpose/pad/slice fuse into one dispatch; rollout
    code that keeps observations lane-dense should call agent_forward_lane.
    """
    return agent_forward_lane(jnp.transpose(x), params, tile_b=tile_b).T


def init_params(key):
    """Deterministic init matching nn.Linear default: U(-1/sqrt(fan_in), 1/sqrt(fan_in))."""
    k1, k2, k3, k4 = jax.random.split(key, 4)
    bound1 = 1.0 / jnp.sqrt(jnp.float32(OBS_DIM))
    bound2 = 1.0 / jnp.sqrt(jnp.float32(HIDDEN))
    w1 = jax.random.uniform(k1, (HIDDEN, OBS_DIM), jnp.float32, -bound1, bound1)
    b1 = jax.random.uniform(k2, (HIDDEN,), jnp.float32, -bound1, bound1)
    w2 = jax.random.uniform(k3, (N_ACTIONS, HIDDEN), jnp.float32, -bound2, bound2)
    b2 = jax.random.uniform(k4, (N_ACTIONS,), jnp.float32, -bound2, bound2)
    return w1, b1, w2, b2


def _reference(x, w1, b1, w2, b2):
    h = jnp.tanh(x @ w1.T + b1)
    logits = h @ w2.T + b2
    return jax.nn.softmax(logits, axis=1)


if __name__ == "__main__":
    key = jax.random.PRNGKey(0)
    kp, kx_loop, kx_lane = jax.random.split(key, 3)

    w1, b1, w2, b2 = init_params(kp)
    params = prepare_params(w1, b1, w2, b2)

    # (batch, tile_b) cases: single tile/chunk; multi-tile + multi-chunk with
    # padding; default big-tile path with grid_n >= 2.
    for batch, tile_b in ((8, DEFAULT_TILE_B), (384, 256), (1000, DEFAULT_TILE_B)):
        kx, kx_loop = jax.random.split(kx_loop)
        x = jax.random.normal(kx, (batch, OBS_DIM), jnp.float32)
        probs = jax.block_until_ready(agent_forward(x, params, tile_b=tile_b))
        ref = _reference(x, w1, b1, w2, b2)
        assert probs.shape == (batch, N_ACTIONS)
        assert jnp.allclose(probs, ref, atol=1e-5, rtol=1e-5), f"mismatch at batch={batch}"
        assert jnp.allclose(jnp.sum(probs, axis=1), 1.0, atol=1e-5)

    # Lane-dense fast path (rollout buffer kept in (OBS_DIM, B) layout).
    x = jax.random.normal(kx_lane, (256, OBS_DIM), jnp.float32)
    probs_t = jax.block_until_ready(agent_forward_lane(x.T, params))
    ref = _reference(x, w1, b1, w2, b2)
    assert probs_t.shape == (N_ACTIONS, 256)
    assert jnp.allclose(probs_t.T, ref, atol=1e-5, rtol=1e-5)

    print("KERNEL_OK")
</pallas_src>

<mosaic_0001>
module attributes {stable_mosaic.version = 11 : i64} {
  func.func @_agent_kernel(%arg0: i32, %arg1: memref<4x128xf32, #tpu.memory_space<vmem>>, %arg2: memref<4x128x128xf32, #tpu.memory_space<vmem>>, %arg3: memref<128x128xf32, #tpu.memory_space<vmem>>, %arg4: memref<128x128xf32, #tpu.memory_space<vmem>>, %arg5: memref<1x128xf32, #tpu.memory_space<vmem>>, %arg6: memref<2x128xf32, #tpu.memory_space<vmem>>) attributes {dimension_semantics = [#tpu.dimension_semantics<parallel>], iteration_bounds = array<i64: 1>, scalar_prefetch = 0 : i64, scratch_operands = 0 : i64, tpu.core_type = #tpu.core_type<tc>, window_params = [{transform_indices = @transform_0, window_bounds = array<i64: 4, 128>}, {pipeline_mode = #tpu.pipeline_mode<synchronous>, transform_indices = @transform_1, window_bounds = array<i64: 4, 128, 128>}, {pipeline_mode = #tpu.pipeline_mode<synchronous>, transform_indices = @transform_2, window_bounds = array<i64: 128, 128>}, {pipeline_mode = #tpu.pipeline_mode<synchronous>, transform_indices = @transform_3, window_bounds = array<i64: 128, 128>}, {pipeline_mode = #tpu.pipeline_mode<synchronous>, transform_indices = @transform_4, window_bounds = array<i64: 1, 128>}, {transform_indices = @transform_5, window_bounds = array<i64: 2, 128>}]} {
    %c0_i32 = arith.constant 0 : i32
    %c1_i32 = arith.constant 1 : i32
    %0 = arith.muli %c0_i32, %c1_i32 : i32
    %c0_i32_0 = arith.constant 0 : i32
    %1 = arith.addi %c0_i32_0, %0 : i32
    %c128_i32 = arith.constant 128 : i32
    %2 = arith.muli %1, %c128_i32 : i32
    %3 = tpu.assume_multiple %2, 128 : i32
    %c0 = arith.constant 0 : index
    %4 = arith.index_cast %3 : i32 to index
    %5 = vector.load %arg1[%c0, %4] : memref<4x128xf32, #tpu.memory_space<vmem>>, vector<4x128xf32>
    %c0_1 = arith.constant 0 : index
    %c0_2 = arith.constant 0 : index
    %6 = vector.load %arg3[%c0_1, %c0_2] : memref<128x128xf32, #tpu.memory_space<vmem>>, vector<128x128xf32>
    %c0_3 = arith.constant 0 : index
    %c0_4 = arith.constant 0 : index
    %c0_5 = arith.constant 0 : index
    %7 = vector.load %arg2[%c0_3, %c0_4, %c0_5] : memref<4x128x128xf32, #tpu.memory_space<vmem>>, vector<1x128x128xf32>
    %8 = vector.shape_cast %7 : vector<1x128x128xf32> to vector<128x128xf32>
    %9 = vector.extract_strided_slice %5 {offsets = [0, 0], sizes = [1, 128], strides = [1, 1]} : vector<4x128xf32> to vector<1x128xf32>
    %10 = vector.broadcast %9 : vector<1x128xf32> to vector<128x128xf32>
    %11 = arith.mulf %8, %10 : vector<128x128xf32>
    %12 = arith.addf %6, %11 : vector<128x128xf32>
    %c1 = arith.constant 1 : index
    %c0_6 = arith.constant 0 : index
    %c0_7 = arith.constant 0 : index
    %13 = vector.load %arg2[%c1, %c0_6, %c0_7] : memref<4x128x128xf32, #tpu.memory_space<vmem>>, vector<1x128x128xf32>
    %14 = vector.shape_cast %13 : vector<1x128x128xf32> to vector<128x128xf32>
    %15 = vector.extract_strided_slice %5 {offsets = [1, 0], sizes = [1, 128], strides = [1, 1]} : vector<4x128xf32> to vector<1x128xf32>
    %16 = vector.broadcast %15 : vector<1x128xf32> to vector<128x128xf32>
    %17 = arith.mulf %14, %16 : vector<128x128xf32>
    %18 = arith.addf %12, %17 : vector<128x128xf32>
    %c2 = arith.constant 2 : index
    %c0_8 = arith.constant 0 : index
    %c0_9 = arith.constant 0 : index
    %19 = vector.load %arg2[%c2, %c0_8, %c0_9] : memref<4x128x128xf32, #tpu.memory_space<vmem>>, vector<1x128x128xf32>
    %20 = vector.shape_cast %19 : vector<1x128x128xf32> to vector<128x128xf32>
    %21 = vector.extract_strided_slice %5 {offsets = [2, 0], sizes = [1, 128], strides = [1, 1]} : vector<4x128xf32> to vector<1x128xf32>
    %22 = vector.broadcast %21 : vector<1x128xf32> to vector<128x128xf32>
    %23 = arith.mulf %20, %22 : vector<128x128xf32>
    %24 = arith.addf %18, %23 : vector<128x128xf32>
    %c3 = arith.constant 3 : index
    %c0_10 = arith.constant 0 : index
    %c0_11 = arith.constant 0 : index
    %25 = vector.load %arg2[%c3, %c0_10, %c0_11] : memref<4x128x128xf32, #tpu.memory_space<vmem>>, vector<1x128x128xf32>
    %26 = vector.shape_cast %25 : vector<1x128x128xf32> to vector<128x128xf32>
    %27 = vector.extract_strided_slice %5 {offsets = [3, 0], sizes = [1, 128], strides = [1, 1]} : vector<4x128xf32> to vector<1x128xf32>
    %28 = vector.broadcast %27 : vector<1x128xf32> to vector<128x128xf32>
    %29 = arith.mulf %26, %28 : vector<128x128xf32>
    %30 = arith.addf %24, %29 : vector<128x128xf32>
    %31 = math.tanh %30 : vector<128x128xf32>
    %c0_12 = arith.constant 0 : index
    %c0_13 = arith.constant 0 : index
    %32 = vector.load %arg4[%c0_12, %c0_13] : memref<128x128xf32, #tpu.memory_space<vmem>>, vector<128x128xf32>
    %33 = arith.mulf %31, %32 : vector<128x128xf32>
    %cst = arith.constant dense<0.000000e+00> : vector<128xf32>
    %34 = vector.multi_reduction <add>, %33, %cst [0] : vector<128x128xf32> to vector<128xf32>
    %35 = vector.shape_cast %34 : vector<128xf32> to vector<1x128xf32>
    %c0_14 = arith.constant 0 : index
    %c0_15 = arith.constant 0 : index
    %36 = vector.load %arg5[%c0_14, %c0_15] : memref<1x128xf32, #tpu.memory_space<vmem>>, vector<1x128xf32>
    %37 = arith.addf %35, %36 : vector<1x128xf32>
    %cst_16 = arith.constant 0.000000e+00 : f32
    %38 = vector.broadcast %cst_16 : f32 to vector<1x128xf32>
    %39 = arith.subf %38, %37 : vector<1x128xf32>
    %40 = math.exp %39 : vector<1x128xf32>
    %cst_17 = arith.constant 1.000000e+00 : f32
    %41 = vector.broadcast %cst_17 : f32 to vector<1x128xf32>
    %42 = arith.addf %41, %40 : vector<1x128xf32>
    %cst_18 = arith.constant 1.000000e+00 : f32
    %43 = vector.broadcast %cst_18 : f32 to vector<1x128xf32>
    %44 = arith.divf %43, %42 : vector<1x128xf32>
    %cst_19 = arith.constant 1.000000e+00 : f32
    %45 = vector.broadcast %cst_19 : f32 to vector<1x128xf32>
    %46 = arith.subf %45, %44 : vector<1x128xf32>
    %47 = tpu.concatenate %44, %46 in 0 : vector<1x128xf32>, vector<1x128xf32> -> vector<2x128xf32>
    %c0_20 = arith.constant 0 : index
    %48 = arith.index_cast %3 : i32 to index
    %49 = vector.load %arg6[%c0_20, %48] : memref<2x128xf32, #tpu.memory_space<vmem>>, vector<2x128xf32>
    tpu.vector_store %arg6[%c0_20, %48], %47 {strides = array<i32>} : memref<2x128xf32, #tpu.memory_space<vmem>>, vector<2x128xf32>,
    %c1_i32_21 = arith.constant 1 : i32
    return
  }
  func.func @transform_0(%arg0: i32) -> (i32, i32) {
    %c0_i32 = arith.constant 0 : i32
    %c0_i32_0 = arith.constant 0 : i32
    return %c0_i32, %arg0 : i32, i32
  }
  func.func @transform_1(%arg0: i32) -> (i32, i32, i32) {
    %c0_i32 = arith.constant 0 : i32
    %c0_i32_0 = arith.constant 0 : i32
    %c0_i32_1 = arith.constant 0 : i32
    %c0_i32_2 = arith.constant 0 : i32
    return %c0_i32, %c0_i32_0, %c0_i32_1 : i32, i32, i32
  }
  func.func @transform_2(%arg0: i32) -> (i32, i32) {
    %c0_i32 = arith.constant 0 : i32
    %c0_i32_0 = arith.constant 0 : i32
    %c0_i32_1 = arith.constant 0 : i32
    return %c0_i32, %c0_i32_0 : i32, i32
  }
  func.func @transform_3(%arg0: i32) -> (i32, i32) {
    %c0_i32 = arith.constant 0 : i32
    %c0_i32_0 = arith.constant 0 : i32
    %c0_i32_1 = arith.constant 0 : i32
    return %c0_i32, %c0_i32_0 : i32, i32
  }
  func.func @transform_4(%arg0: i32) -> (i32, i32) {
    %c0_i32 = arith.constant 0 : i32
    %c0_i32_0 = arith.constant 0 : i32
    %c0_i32_1 = arith.constant 0 : i32
    return %c0_i32, %c0_i32_0 : i32, i32
  }
  func.func @transform_5(%arg0: i32) -> (i32, i32) {
    %c0_i32 = arith.constant 0 : i32
    %c0_i32_0 = arith.constant 0 : i32
    return %c0_i32, %arg0 : i32, i32
  }
}

</mosaic_0001>

<llo_original>
// kernel: agent_forward_lane.1
$region0: #{agent_forward_lane.1}
  #allocation0 [shape = 'u32[]', space=smem, size = 0x4, offset = 0x4, fixed_abs, tag = 'smem constant byte address 0x4 - core index']
  #allocation1 [shape = 'u32[144,128]{1,0:T(1,128)}', space=vmem, size = 0x12000, scoped, tag = 'internal scratch']
  %s0 = inlined_call_operand.vmem [shape: f32[4,128], index: 0, kind: input, shape index: {}]
  %s1 = inlined_call_operand.hbm [shape: f32[4,128,128], index: 1, kind: input, shape index: {}]
  %s2 = inlined_call_operand.hbm [shape: f32[128,128], index: 2, kind: input, shape index: {}]
  %s3 = inlined_call_operand.hbm [shape: f32[128,128], index: 3, kind: input, shape index: {}]
  %s4 = inlined_call_operand.vmem [shape: f32[1,128], index: 4, kind: input, shape index: {}]
  %s5 = inlined_call_operand.hbm [shape: f32[2,128], index: 5, kind: output, shape index: {}]
  %s6 = sld [smem:[#allocation0]]
  $region42: #{agent_forward_lane.1} parent=0
    _
  %s8 = ssub.s32 1, %s6
  %s9 = scalar_select 0, %s8, %s6
  $region1: #{agent_forward_lane.1} parent=0
    #allocation2 [shape = 'u8[262144]{0}', space=vmem, size = 0x40000, scoped, tag = 'input window, operand 1, single buffered']
    #allocation3 [shape = 's32[1]{0}', space=sflag, size = 0x4, scoped, tag = 'scoped memory for agent_forward_lane.1']
    #allocation4 [shape = 's32[1]{0}', space=sflag, size = 0x4, scoped, tag = 'scoped memory for agent_forward_lane.1']
    #allocation5 [shape = 'u8[65536]{0}', space=vmem, size = 0x10000, scoped, tag = 'input window, operand 2, single buffered']
    #allocation6 [shape = 's32[1]{0}', space=sflag, size = 0x4, scoped, tag = 'scoped memory for agent_forward_lane.1']
    #allocation7 [shape = 'u8[65536]{0}', space=vmem, size = 0x10000, scoped, tag = 'input window, operand 3, single buffered']
    #allocation8 [shape = 'u8[1024]{0}', space=vmem, size = 0x400, scoped, tag = 'output window, operand 0, single buffered']
    %10 = vsyncpa [#allocation3], 0
    %11 = vsyncpa [#allocation6], 0
    %12 = vsyncpa [#allocation4], 0
    // Predicated region
    $region2: #{agent_forward_lane.1} parent=1 // pred_check
      _
    $region3: #{agent_forward_lane.1} parent=1 // pred_check_branch
      %14 = sbr.rel (0) target = $region5
    $region4: #{agent_forward_lane.1} parent=1 // pred_region
      _
    $region5: #{agent_forward_lane.1} parent=1 // pred_fallthru
      _
    // Predicated region
    $region6: #{agent_forward_lane.1} parent=1 // pred_check
      _
    $region7: #{agent_forward_lane.1} parent=1 // pred_check_branch
      %16 = sbr.rel (0) target = $region9
    $region8: #{agent_forward_lane.1} parent=1 // pred_region
      %s18 = ssub.s32 8192, 8192
      %19 = vsyncadd [#allocation3], %s18
      %s20 = sshll.u32 [#allocation2], 4
      %s21 = int_to_ptr.vmem [resolvable:$true] %s20
      %26 = dma.hbm_to_vmem [thread:$0]  %s1, 8192, %s21, [#allocation3], 128, 128, 8
    $region9: #{agent_forward_lane.1} parent=1 // pred_fallthru
      _
    // Predicated region
    $region10: #{agent_forward_lane.1} parent=1 // pred_check
      _
    $region11: #{agent_forward_lane.1} parent=1 // pred_check_branch
      %28 = sbr.rel (0) target = $region13
    $region12: #{agent_forward_lane.1} parent=1 // pred_region
      %s30 = ssub.s32 2048, 2048
      %31 = vsyncadd [#allocation6], %s30
      %s32 = sshll.u32 [#allocation5], 4
      %s33 = int_to_ptr.vmem [resolvable:$true] %s32
      %38 = dma.hbm_to_vmem [thread:$0]  %s2, 2048, %s33, [#allocation6], 128, 128, 8
    $region13: #{agent_forward_lane.1} parent=1 // pred_fallthru
      _
    // Predicated region
    $region14: #{agent_forward_lane.1} parent=1 // pred_check
      _
    $region15: #{agent_forward_lane.1} parent=1 // pred_check_branch
      %40 = sbr.rel (0) target = $region17
    $region16: #{agent_forward_lane.1} parent=1 // pred_region
      %s42 = ssub.s32 2048, 2048
      %43 = vsyncadd [#allocation6], %s42
      %s44 = sshll.u32 [#allocation7], 4
      %s45 = int_to_ptr.vmem [resolvable:$true] %s44
      %50 = dma.hbm_to_vmem [thread:$0]  %s3, 2048, %s45, [#allocation6], 128, 128, 8
    $region17: #{agent_forward_lane.1} parent=1 // pred_fallthru
      _
    // Predicated region
    $region18: #{agent_forward_lane.1} parent=1 // pred_check
      _
    $region19: #{agent_forward_lane.1} parent=1 // pred_check_branch
      %52 = sbr.rel (0) target = $region21
    $region20: #{agent_forward_lane.1} parent=1 // pred_region
      _
    $region21: #{agent_forward_lane.1} parent=1 // pred_fallthru
      _
    // Predicated region
    $region22: #{agent_forward_lane.1} parent=1 // pred_check
      _
    $region23: #{agent_forward_lane.1} parent=1 // pred_check_branch
      %54 = sbr.rel (0) target = $region25
    $region24: #{agent_forward_lane.1} parent=1 // pred_region
      %55 = dma.done [#allocation3], 8192
    $region25: #{agent_forward_lane.1} parent=1 // pred_fallthru
      _
    // Predicated region
    $region26: #{agent_forward_lane.1} parent=1 // pred_check
      _
    $region27: #{agent_forward_lane.1} parent=1 // pred_check_branch
      %57 = sbr.rel (0) target = $region29
    $region28: #{agent_forward_lane.1} parent=1 // pred_region
      %58 = dma.done [#allocation6], 2048
    $region29: #{agent_forward_lane.1} parent=1 // pred_fallthru
      _
    // Predicated region
    $region30: #{agent_forward_lane.1} parent=1 // pred_check
      _
    $region31: #{agent_forward_lane.1} parent=1 // pred_check_branch
      %60 = sbr.rel (0) target = $region33
    $region32: #{agent_forward_lane.1} parent=1 // pred_region
      %61 = dma.done [#allocation6], 2048
    $region33: #{agent_forward_lane.1} parent=1 // pred_fallthru
      _
    %v62 = vld [vmem:[%s0] sm:$0xf]
    %v63 = vld [vmem:[#allocation5] sm:$0xff]
    %v64 = vld [vmem:[#allocation5 + $0x8] sm:$0xff]
    %v65 = vld [vmem:[#allocation5 + $0x10] sm:$0xff]
    %v66 = vld [vmem:[#allocation5 + $0x18] sm:$0xff]
    %v67 = vld [vmem:[#allocation5 + $0x20] sm:$0xff]
    %v68 = vld [vmem:[#allocation5 + $0x28] sm:$0xff]
    %v69 = vld [vmem:[#allocation5 + $0x30] sm:$0xff]
    %v70 = vld [vmem:[#allocation5 + $0x38] sm:$0xff]
    %v71 = vld [vmem:[#allocation5 + $0x40] sm:$0xff]
    %v72 = vld [vmem:[#allocation5 + $0x48] sm:$0xff]
    %v73 = vld [vmem:[#allocation5 + $0x50] sm:$0xff]
    %v74 = vld [vmem:[#allocation5 + $0x58] sm:$0xff]
    %v75 = vld [vmem:[#allocation5 + $0x60] sm:$0xff]
    %v76 = vld [vmem:[#allocation5 + $0x68] sm:$0xff]
    %v77 = vld [vmem:[#allocation5 + $0x70] sm:$0xff]
    %v78 = vld [vmem:[#allocation5 + $0x78] sm:$0xff]
    %v79 = vld [vmem:[#allocation2] sm:$0xff]
    %v80 = vld [vmem:[#allocation2 + $0x8] sm:$0xff]
    %v81 = vld [vmem:[#allocation2 + $0x10] sm:$0xff]
    %v82 = vld [vmem:[#allocation2 + $0x18] sm:$0xff]
    %v83 = vld [vmem:[#allocation2 + $0x20] sm:$0xff]
    %v84 = vld [vmem:[#allocation2 + $0x28] sm:$0xff]
    %v85 = vld [vmem:[#allocation2 + $0x30] sm:$0xff]
    %v86 = vld [vmem:[#allocation2 + $0x38] sm:$0xff]
    %v87 = vld [vmem:[#allocation2 + $0x40] sm:$0xff]
    %v88 = vld [vmem:[#allocation2 + $0x48] sm:$0xff]
    %v89 = vld [vmem:[#allocation2 + $0x50] sm:$0xff]
    %v90 = vld [vmem:[#allocation2 + $0x58] sm:$0xff]
    %v91 = vld [vmem:[#allocation2 + $0x60] sm:$0xff]
    %v92 = vld [vmem:[#allocation2 + $0x68] sm:$0xff]
    %v93 = vld [vmem:[#allocation2 + $0x70] sm:$0xff]
    %v94 = vld [vmem:[#allocation2 + $0x78] sm:$0xff]
    %v95 = vlaneseq
    %v96 = vshrl.u32 %v95, 7
    %v97 = vsub.s32 0, %v96
    %v98 = vrot.slane %v62, %v97
    %v99 = vmul.f32 %v79, %v98
    %v100 = vmul.f32 %v80, %v98
    %v101 = vmul.f32 %v81, %v98
    %v102 = vmul.f32 %v82, %v98
    %v103 = vmul.f32 %v83, %v98
    %v104 = vmul.f32 %v84, %v98
    %v105 = vmul.f32 %v85, %v98
    %v106 = vmul.f32 %v86, %v98
    %v107 = vmul.f32 %v87, %v98
    %v108 = vmul.f32 %v88, %v98
    %v109 = vmul.f32 %v89, %v98
    %v110 = vmul.f32 %v90, %v98
    %v111 = vmul.f32 %v91, %v98
    %v112 = vmul.f32 %v92, %v98
    %v113 = vmul.f32 %v93, %v98
    %v114 = vmul.f32 %v94, %v98
    %v115 = vadd.f32 %v63, %v99
    %v116 = vadd.f32 %v64, %v100
    %v117 = vadd.f32 %v65, %v101
    %v118 = vadd.f32 %v66, %v102
    %v119 = vadd.f32 %v67, %v103
    %v120 = vadd.f32 %v68, %v104
    %v121 = vadd.f32 %v69, %v105
    %v122 = vadd.f32 %v70, %v106
    %v123 = vadd.f32 %v71, %v107
    %v124 = vadd.f32 %v72, %v108
    %v125 = vadd.f32 %v73, %v109
    %v126 = vadd.f32 %v74, %v110
    %v127 = vadd.f32 %v75, %v111
    %v128 = vadd.f32 %v76, %v112
    %v129 = vadd.f32 %v77, %v113
    %v130 = vadd.f32 %v78, %v114
    %s131 = scalar_lea.vmem [#allocation2], 128
    %v132 = vld [vmem:[%s131] sm:$0xff]
    %v133 = vld [vmem:[%s131 + $0x8] sm:$0xff]
    %v134 = vld [vmem:[%s131 + $0x10] sm:$0xff]
    %v135 = vld [vmem:[%s131 + $0x18] sm:$0xff]
    %v136 = vld [vmem:[%s131 + $0x20] sm:$0xff]
    %v137 = vld [vmem:[%s131 + $0x28] sm:$0xff]
    %v138 = vld [vmem:[%s131 + $0x30] sm:$0xff]
    %v139 = vld [vmem:[%s131 + $0x38] sm:$0xff]
    %v140 = vld [vmem:[%s131 + $0x40] sm:$0xff]
    %v141 = vld [vmem:[%s131 + $0x48] sm:$0xff]
    %v142 = vld [vmem:[%s131 + $0x50] sm:$0xff]
    %v143 = vld [vmem:[%s131 + $0x58] sm:$0xff]
    %v144 = vld [vmem:[%s131 + $0x60] sm:$0xff]
    %v145 = vld [vmem:[%s131 + $0x68] sm:$0xff]
    %v146 = vld [vmem:[%s131 + $0x70] sm:$0xff]
    %v147 = vld [vmem:[%s131 + $0x78] sm:$0xff]
    %v148 = vlaneseq
    %v149 = vshrl.u32 %v148, 7
    %v150 = vsub.s32 1, %v149
    %v151 = vrot.slane %v62, %v150
    %v152 = vmul.f32 %v132, %v151
    %v153 = vmul.f32 %v133, %v151
    %v154 = vmul.f32 %v134, %v151
    %v155 = vmul.f32 %v135, %v151
    %v156 = vmul.f32 %v136, %v151
    %v157 = vmul.f32 %v137, %v151
    %v158 = vmul.f32 %v138, %v151
    %v159 = vmul.f32 %v139, %v151
    %v160 = vmul.f32 %v140, %v151
    %v161 = vmul.f32 %v141, %v151
    %v162 = vmul.f32 %v142, %v151
    %v163 = vmul.f32 %v143, %v151
    %v164 = vmul.f32 %v144, %v151
    %v165 = vmul.f32 %v145, %v151
    %v166 = vmul.f32 %v146, %v151
    %v167 = vmul.f32 %v147, %v151
    %v168 = vadd.f32 %v115, %v152
    %v169 = vadd.f32 %v116, %v153
    %v170 = vadd.f32 %v117, %v154
    %v171 = vadd.f32 %v118, %v155
    %v172 = vadd.f32 %v119, %v156
    %v173 = vadd.f32 %v120, %v157
    %v174 = vadd.f32 %v121, %v158
    %v175 = vadd.f32 %v122, %v159
    %v176 = vadd.f32 %v123, %v160
    %v177 = vadd.f32 %v124, %v161
    %v178 = vadd.f32 %v125, %v162
    %v179 = vadd.f32 %v126, %v163
    %v180 = vadd.f32 %v127, %v164
    %v181 = vadd.f32 %v128, %v165
    %v182 = vadd.f32 %v129, %v166
    %v183 = vadd.f32 %v130, %v167
    %s184 = scalar_lea.vmem [#allocation2], 256
    %v185 = vld [vmem:[%s184] sm:$0xff]
    %v186 = vld [vmem:[%s184 + $0x8] sm:$0xff]
    %v187 = vld [vmem:[%s184 + $0x10] sm:$0xff]
    %v188 = vld [vmem:[%s184 + $0x18] sm:$0xff]
    %v189 = vld [vmem:[%s184 + $0x20] sm:$0xff]
    %v190 = vld [vmem:[%s184 + $0x28] sm:$0xff]
    %v191 = vld [vmem:[%s184 + $0x30] sm:$0xff]
    %v192 = vld [vmem:[%s184 + $0x38] sm:$0xff]
    %v193 = vld [vmem:[%s184 + $0x40] sm:$0xff]
    %v194 = vld [vmem:[%s184 + $0x48] sm:$0xff]
    %v195 = vld [vmem:[%s184 + $0x50] sm:$0xff]
    %v196 = vld [vmem:[%s184 + $0x58] sm:$0xff]
    %v197 = vld [vmem:[%s184 + $0x60] sm:$0xff]
    %v198 = vld [vmem:[%s184 + $0x68] sm:$0xff]
    %v199 = vld [vmem:[%s184 + $0x70] sm:$0xff]
    %v200 = vld [vmem:[%s184 + $0x78] sm:$0xff]
    %v201 = vlaneseq
    %v202 = vshrl.u32 %v201, 7
    %v203 = vsub.s32 2, %v202
    %v204 = vrot.slane %v62, %v203
    %v205 = vmul.f32 %v185, %v204
    %v206 = vmul.f32 %v186, %v204
    %v207 = vmul.f32 %v187, %v204
    %v208 = vmul.f32 %v188, %v204
    %v209 = vmul.f32 %v189, %v204
    %v210 = vmul.f32 %v190, %v204
    %v211 = vmul.f32 %v191, %v204
    %v212 = vmul.f32 %v192, %v204
    %v213 = vmul.f32 %v193, %v204
    %v214 = vmul.f32 %v194, %v204
    %v215 = vmul.f32 %v195, %v204
    %v216 = vmul.f32 %v196, %v204
    %v217 = vmul.f32 %v197, %v204
    %v218 = vmul.f32 %v198, %v204
    %v219 = vmul.f32 %v199, %v204
    %v220 = vmul.f32 %v200, %v204
    %v221 = vadd.f32 %v168, %v205
    %v222 = vadd.f32 %v169, %v206
    %v223 = vadd.f32 %v170, %v207
    %v224 = vadd.f32 %v171, %v208
    %v225 = vadd.f32 %v172, %v209
    %v226 = vadd.f32 %v173, %v210
    %v227 = vadd.f32 %v174, %v211
    %v228 = vadd.f32 %v175, %v212
    %v229 = vadd.f32 %v176, %v213
    %v230 = vadd.f32 %v177, %v214
    %v231 = vadd.f32 %v178, %v215
    %v232 = vadd.f32 %v179, %v216
    %v233 = vadd.f32 %v180, %v217
    %v234 = vadd.f32 %v181, %v218
    %v235 = vadd.f32 %v182, %v219
    %v236 = vadd.f32 %v183, %v220
    %s237 = scalar_lea.vmem [#allocation2], 384
    %v238 = vld [vmem:[%s237] sm:$0xff]
    %v239 = vld [vmem:[%s237 + $0x8] sm:$0xff]
    %v240 = vld [vmem:[%s237 + $0x10] sm:$0xff]
    %v241 = vld [vmem:[%s237 + $0x18] sm:$0xff]
    %v242 = vld [vmem:[%s237 + $0x20] sm:$0xff]
    %v243 = vld [vmem:[%s237 + $0x28] sm:$0xff]
    %v244 = vld [vmem:[%s237 + $0x30] sm:$0xff]
    %v245 = vld [vmem:[%s237 + $0x38] sm:$0xff]
    %v246 = vld [vmem:[%s237 + $0x40] sm:$0xff]
    %v247 = vld [vmem:[%s237 + $0x48] sm:$0xff]
    %v248 = vld [vmem:[%s237 + $0x50] sm:$0xff]
    %v249 = vld [vmem:[%s237 + $0x58] sm:$0xff]
    %v250 = vld [vmem:[%s237 + $0x60] sm:$0xff]
    %v251 = vld [vmem:[%s237 + $0x68] sm:$0xff]
    %v252 = vld [vmem:[%s237 + $0x70] sm:$0xff]
    %v253 = vld [vmem:[%s237 + $0x78] sm:$0xff]
    %v254 = vlaneseq
    %v255 = vshrl.u32 %v254, 7
    %v256 = vsub.s32 3, %v255
    %v257 = vrot.slane %v62, %v256
    %v258 = vmul.f32 %v238, %v257
    %v259 = vmul.f32 %v239, %v257
    %v260 = vmul.f32 %v240, %v257
    %v261 = vmul.f32 %v241, %v257
    %v262 = vmul.f32 %v242, %v257
    %v263 = vmul.f32 %v243, %v257
    %v264 = vmul.f32 %v244, %v257
    %v265 = vmul.f32 %v245, %v257
    %v266 = vmul.f32 %v246, %v257
    %v267 = vmul.f32 %v247, %v257
    %v268 = vmul.f32 %v248, %v257
    %v269 = vmul.f32 %v249, %v257
    %v270 = vmul.f32 %v250, %v257
    %v271 = vmul.f32 %v251, %v257
    %v272 = vmul.f32 %v252, %v257
    %v273 = vmul.f32 %v253, %v257
    %v274 = vadd.f32 %v221, %v258
    %v275 = vadd.f32 %v222, %v259
    %v276 = vadd.f32 %v223, %v260
    %v277 = vadd.f32 %v224, %v261
    %v278 = vadd.f32 %v225, %v262
    %v279 = vadd.f32 %v226, %v263
    %v280 = vadd.f32 %v227, %v264
    %v281 = vadd.f32 %v228, %v265
    %v282 = vadd.f32 %v229, %v266
    %v283 = vadd.f32 %v230, %v267
    %v284 = vadd.f32 %v231, %v268
    %v285 = vadd.f32 %v232, %v269
    %v286 = vadd.f32 %v233, %v270
    %v287 = vadd.f32 %v234, %v271
    %v288 = vadd.f32 %v235, %v272
    %v289 = vadd.f32 %v236, %v273
    %v290 = vtanh.pop %v274
    %v291 = vtanh.pop %v275
    %v292 = vtanh.pop %v276
    %v293 = vtanh.pop %v277
    %v294 = vtanh.pop %v278
    %v295 = vtanh.pop %v279
    %v296 = vtanh.pop %v280
    %v297 = vtanh.pop %v281
    %v298 = vtanh.pop %v282
    %v299 = vtanh.pop %v283
    %v300 = vtanh.pop %v284
    %v301 = vtanh.pop %v285
    %v302 = vtanh.pop %v286
    %v303 = vtanh.pop %v287
    %v304 = vtanh.pop %v288
    %v305 = vtanh.pop %v289
    %v306 = vld [vmem:[#allocation7] sm:$0xff]
    %v307 = vld [vmem:[#allocation7 + $0x8] sm:$0xff]
    %v308 = vld [vmem:[#allocation7 + $0x10] sm:$0xff]
    %v309 = vld [vmem:[#allocation7 + $0x18] sm:$0xff]
    %v310 = vld [vmem:[#allocation7 + $0x20] sm:$0xff]
    %v311 = vld [vmem:[#allocation7 + $0x28] sm:$0xff]
    %v312 = vld [vmem:[#allocation7 + $0x30] sm:$0xff]
    %v313 = vld [vmem:[#allocation7 + $0x38] sm:$0xff]
    %v314 = vld [vmem:[#allocation7 + $0x40] sm:$0xff]
    %v315 = vld [vmem:[#allocation7 + $0x48] sm:$0xff]
    %v316 = vld [vmem:[#allocation7 + $0x50] sm:$0xff]
    %v317 = vld [vmem:[#allocation7 + $0x58] sm:$0xff]
    %v318 = vld [vmem:[#allocation7 + $0x60] sm:$0xff]
    %v319 = vld [vmem:[#allocation7 + $0x68] sm:$0xff]
    %v320 = vld [vmem:[#allocation7 + $0x70] sm:$0xff]
    %v321 = vld [vmem:[#allocation7 + $0x78] sm:$0xff]
    %v322 = vmul.f32 %v290, %v306
    %v323 = vmul.f32 %v291, %v307
    %v324 = vmul.f32 %v292, %v308
    %v325 = vmul.f32 %v293, %v309
    %v326 = vmul.f32 %v294, %v310
    %v327 = vmul.f32 %v295, %v311
    %v328 = vmul.f32 %v296, %v312
    %v329 = vmul.f32 %v297, %v313
    %v330 = vmul.f32 %v298, %v314
    %v331 = vmul.f32 %v299, %v315
    %v332 = vmul.f32 %v300, %v316
    %v333 = vmul.f32 %v301, %v317
    %v334 = vmul.f32 %v302, %v318
    %v335 = vmul.f32 %v303, %v319
    %v336 = vmul.f32 %v304, %v320
    %v337 = vmul.f32 %v305, %v321
    %v338 = vadd.f32 %v322, %v323
    %v339 = vadd.f32 %v338, %v324
    %v340 = vadd.f32 %v339, %v325
    %v341 = vadd.f32 %v340, %v326
    %v342 = vadd.f32 %v341, %v327
    %v343 = vadd.f32 %v342, %v328
    %v344 = vadd.f32 %v343, %v329
    %v345 = vadd.f32 %v344, %v330
    %v346 = vadd.f32 %v345, %v331
    %v347 = vadd.f32 %v346, %v332
    %v348 = vadd.f32 %v347, %v333
    %v349 = vadd.f32 %v348, %v334
    %v350 = vadd.f32 %v349, %v335
    %v351 = vadd.f32 %v350, %v336
    %v352 = vadd.f32 %v351, %v337
    %v353 = vrot.slane %v352, 4
    %v354 = vadd.f32 %v352, %v353
    %v355 = vrot.slane %v354, 2
    %v356 = vadd.f32 %v354, %v355
    %v357 = vrot.slane %v356, 1
    %v358 = vadd.f32 %v356, %v357
    %v359 = vld [vmem:[%s4] sm:$0x1]
    %v360 = vadd.f32 %v358, %v359
    %v361 = vsub.f32 0.0, %v360
    %v362 = vmul.f32 %v361, 1.442695
    %v363 = vpow.pop %v362
    %v364 = vadd.f32 %v363, 1.0
    %v365 = vrcp.pop %v364
    %v366 = vmul.f32 1.0, %v365
    %v367 = vsub.f32 1.0, %v366
    %v369 = vrot.slane %v367, 7
    %vm371 = vcmask 1040384
    %v372 = vsel %vm371, %v366, %v369
    %373 = vst [vmem:[#allocation8] sm:$0x3] %v372
    // Predicated region
    $region34: #{agent_forward_lane.1} parent=1 // pred_check
      _
    $region35: #{agent_forward_lane.1} parent=1 // pred_check_branch
      %375 = sbr.rel (0) target = $region37
    $region36: #{agent_forward_lane.1} parent=1 // pred_region
      %s377 = ssub.s32 32, 32
      %378 = vsyncadd [#allocation4], %s377
      %s380 = sshll.u32 [#allocation8], 4
      %s381 = int_to_ptr.vmem [resolvable:$true] %s380
      %383 = dma.vmem_to_hbm [thread:$0]  %s381, 32, %s5, [#allocation4]
    $region37: #{agent_forward_lane.1} parent=1 // pred_fallthru
      _
    // Predicated region
    $region38: #{agent_forward_lane.1} parent=1 // pred_check
      _
    $region39: #{agent_forward_lane.1} parent=1 // pred_check_branch
      %385 = sbr.rel (0) target = $region41
    $region40: #{agent_forward_lane.1} parent=1 // pred_region
      %386 = dma.done [#allocation4], 32
    $region41: #{agent_forward_lane.1} parent=1 // pred_fallthru
      _
    %387 = vsyncpa [#allocation3], 1
    %388 = vsyncpa [#allocation6], 1
    %389 = vsyncpa [#allocation4], 1

</llo_original>
